<compile_context>
chip_gen: v5e
topology: v5e:2x2
jax: 0.10.0
libtpu: 0.0.40
codegen_flags: <defaults>
</compile_context>

<pallas_src>
import functools

import jax
import jax.numpy as jnp
from jax.experimental import pallas as pl
from jax.experimental.pallas import tpu as pltpu


def _round_up(x: int, m: int) -> int:
    return ((x + m - 1) // m) * m


def _culoss_kernel(conf_ref, logits_l_ref, logits_u_ref,
                   labels_l_ref, labels_u_ref, out_ref,
                   acc_l_ref, acc_u_ref, acc_c_ref,
                   *, n_rows, tile_n, tiles_per_par):
    core = pl.program_id(0)      # "parallel" core-split axis
    step = pl.program_id(1)      # "arbitrary" reduction axis
    last = pl.num_programs(1) - 1

    @pl.when(step == 0)
    def _init():
        acc_l_ref[...] = jnp.zeros_like(acc_l_ref)
        acc_u_ref[...] = jnp.zeros_like(acc_u_ref)
        acc_c_ref[...] = jnp.zeros_like(acc_c_ref)

    c = logits_l_ref.shape[-1]

    # Intended (unclamped) global row-tile handled by this (core, step).
    tile = core * tiles_per_par + step
    row = tile * tile_n + jax.lax.broadcasted_iota(jnp.int32, (tile_n, 1), 0)
    row_mask = row < n_rows                                     # (tile_n, 1)

    # (1, C) class iota; broadcasts against the (tile_n, 1) labels -- no
    # (tile_n, C) int32 temporary is materialized.
    cls = jax.lax.broadcasted_iota(jnp.int32, (1, c), 1)

    def ce_rows(logits_ref, labels_ref):
        x = logits_ref[...].astype(jnp.float32)                 # (tile_n, C)
        y = labels_ref[...].astype(jnp.int32)                   # (tile_n, 1)
        m = jnp.max(x, axis=-1, keepdims=True)
        lse = m + jnp.log(jnp.sum(jnp.exp(x - m), axis=-1, keepdims=True))
        picked = jnp.sum(jnp.where(cls == y, x, 0.0), axis=-1, keepdims=True)
        # Select (not mask-multiply): NaN/Inf in padded rows must never propagate.
        return jnp.where(row_mask, lse - picked, 0.0)           # (tile_n, 1)

    # Per-row partial sums; the cross-sublane reduce happens only at finalize.
    acc_l_ref[...] += ce_rows(logits_l_ref, labels_l_ref)
    acc_u_ref[...] += ce_rows(logits_u_ref, labels_u_ref)
    acc_c_ref[...] += jnp.where(row_mask, conf_ref[...].astype(jnp.float32), 0.0)

    @pl.when(step == last)
    def _finalize():
        s_l = jnp.sum(acc_l_ref[...])
        s_u = jnp.sum(acc_u_ref[...])
        s_c = jnp.sum(acc_c_ref[...])
        lane = jax.lax.broadcasted_iota(jnp.int32, out_ref.shape, 2)
        out_ref[...] = jnp.where(lane == 0, s_l,
                       jnp.where(lane == 1, s_u,
                       jnp.where(lane == 2, s_c, 0.0)))


def cu_loss(true_conf, lamba, logits_l, logits_u, labels_l, labels_u,
            *, tile_n=None, num_par=2):
    """true_conf: (N,1) f32, lamba: (1,) f32, logits_*: (N,C) float, labels_*: (N,1) int."""
    n, c = logits_l.shape
    assert logits_u.shape == (n, c)
    assert labels_l.shape == (n, 1) and labels_u.shape == (n, 1)
    assert true_conf.shape == (n, 1)
    assert lamba.shape == (1,)

    itemsize = jnp.dtype(logits_l.dtype).itemsize
    align = {4: 8, 2: 16, 1: 32}.get(itemsize, 8)   # dtype-aware sublane packing
    cpad = _round_up(c, 128)

    # Per-row VMEM bytes: double-buffered pipeline inputs + in-kernel f32
    # compute temporaries (f32 cast, x-m, exp(x-m), masked pick, slack).
    per_row = (2 * 2 * cpad * itemsize              # logits_l/logits_u, 2 buffers each
               + 3 * 2 * 128 * 4                    # conf + 2 labels, lane-padded
               + 6 * cpad * 4                       # f32 temporaries in ce_rows
               + 3 * 4)                             # (tile_n,1) accumulators

    # Generation-aware VMEM cap: 0.75 x physical per-core VMEM.
    try:
        vmem_phys = pltpu.get_tpu_info().vmem_capacity_bytes
    except Exception:
        vmem_phys = 64 << 20                        # conservative (v7x per-core)
    vmem_budget = int(0.75 * vmem_phys)

    if tile_n is None:
        tile_n = (vmem_budget - (2 << 20)) // per_row   # 2 MiB fixed headroom
        tile_n = max(align, min(1024, (tile_n // align) * align))
        tile_n = min(tile_n, _round_up(n, align))       # never exceed padded batch
    assert tile_n % align == 0, (
        f"tile_n must be a multiple of {align} for logits dtype {logits_l.dtype}")

    n_row_blocks = pl.cdiv(n, tile_n)
    num_par = max(1, min(num_par, n_row_blocks))
    tiles_per_par = pl.cdiv(n_row_blocks, num_par)
    grid = (num_par, tiles_per_par)

    def row_block(ci, ti):
        t = ci * tiles_per_par + ti
        # Clamp fully-out-of-range tiles to a valid block; their rows are
        # discarded by the in-kernel row_mask (which uses the unclamped index).
        return (jnp.minimum(t, n_row_blocks - 1), 0)

    kernel = functools.partial(_culoss_kernel, n_rows=n, tile_n=tile_n,
                               tiles_per_par=tiles_per_par)

    out = pl.pallas_call(
        kernel,
        out_shape=jax.ShapeDtypeStruct((num_par, 8, 128), jnp.float32),
        grid=grid,
        in_specs=[
            pl.BlockSpec((tile_n, 1), row_block),           # true_conf
            pl.BlockSpec((tile_n, c), row_block),           # logits_l
            pl.BlockSpec((tile_n, c), row_block),           # logits_u
            pl.BlockSpec((tile_n, 1), row_block),           # labels_l
            pl.BlockSpec((tile_n, 1), row_block),           # labels_u
        ],
        out_specs=pl.BlockSpec((1, 8, 128), lambda ci, ti: (ci, 0, 0)),
        scratch_shapes=[pltpu.VMEM((tile_n, 1), jnp.float32)] * 3,
        compiler_params=pltpu.CompilerParams(
            dimension_semantics=("parallel", "arbitrary"),
            vmem_limit_bytes=vmem_budget,
        ),
    )(true_conf, logits_l, logits_u, labels_l, labels_u)

    # Combine per-core partial sums: a handful of scalar ops in the wrapper.
    totals = jnp.sum(out[:, 0, :3], axis=0)          # [sum_ce_l, sum_ce_u, sum_conf]
    inv_n = jnp.float32(1.0 / n)
    ce_l = totals[0] * inv_n
    ce_u = totals[1] * inv_n
    mean_conf = totals[2] * inv_n
    lam = lamba[0].astype(jnp.float32)
    return (mean_conf - lam) * ce_l + lam * ce_u


def cu_loss_ref(true_conf, lamba, logits_l, logits_u, labels_l, labels_u):
    """Pure-JAX reference mirroring the PyTorch forward."""
    def mean_ce(logits, labels):
        x = logits.astype(jnp.float32)
        lse = jax.nn.logsumexp(x, axis=-1)
        picked = jnp.take_along_axis(x, labels, axis=-1)[:, 0]
        return jnp.mean(lse - picked)

    ce_l = mean_ce(logits_l, labels_l)
    ce_u = mean_ce(logits_u, labels_u)
    obj1 = jnp.mean((true_conf - lamba) * ce_l)
    obj2 = lamba[0] * ce_u
    return obj1 + obj2


if __name__ == "__main__":
    key = jax.random.PRNGKey(0)
    k1, k2, k3, k4, k5 = jax.random.split(key, 5)

    N = 20   # deliberately not a multiple of 8 to exercise the partial-tile mask
    C = 16   # number of classes

    true_conf = jax.random.uniform(k1, (N, 1), dtype=jnp.float32)
    lamba = jnp.array([0.3], dtype=jnp.float32)
    logits_l = jax.random.normal(k2, (N, C), dtype=jnp.float32)
    logits_u = jax.random.normal(k3, (N, C), dtype=jnp.float32)
    labels_l = jax.random.randint(k4, (N, 1), 0, C, dtype=jnp.int32)
    labels_u = jax.random.randint(k5, (N, 1), 0, C, dtype=jnp.int32)

    ref = cu_loss_ref(true_conf, lamba, logits_l, logits_u, labels_l, labels_u)

    # Multi-tile + 2-way core-split path: grid (2, 2); exercises both the
    # partial last tile and a fully-out-of-range (clamped + masked) tile.
    out_tiled = jax.block_until_ready(
        cu_loss(true_conf, lamba, logits_l, logits_u, labels_l, labels_u, tile_n=8))
    assert jnp.allclose(out_tiled, ref, rtol=1e-5, atol=1e-5), (out_tiled, ref)

    # Auto tile-size path (single tile, single core at this small N).
    out_auto = jax.block_until_ready(
        cu_loss(true_conf, lamba, logits_l, logits_u, labels_l, labels_u))
    assert jnp.allclose(out_auto, ref, rtol=1e-5, atol=1e-5), (out_auto, ref)

    # bf16 logits path (halves HBM logits traffic; kernel upcasts to f32).
    logits_l_bf = logits_l.astype(jnp.bfloat16)
    logits_u_bf = logits_u.astype(jnp.bfloat16)
    ref_bf = cu_loss_ref(true_conf, lamba,
                         logits_l_bf.astype(jnp.float32),
                         logits_u_bf.astype(jnp.float32),
                         labels_l, labels_u)
    out_bf = jax.block_until_ready(
        cu_loss(true_conf, lamba, logits_l_bf, logits_u_bf,
                labels_l, labels_u, tile_n=16))
    assert jnp.allclose(out_bf, ref_bf, rtol=1e-5, atol=1e-5), (out_bf, ref_bf)

    print("KERNEL_OK")
</pallas_src>

<mosaic_0001>
module attributes {stable_mosaic.version = 11 : i64} {
  func.func @_culoss_kernel(%arg0: i32, %arg1: i32, %arg2: memref<8x1xf32, #tpu.memory_space<vmem>>, %arg3: memref<8x16xf32, #tpu.memory_space<vmem>>, %arg4: memref<8x16xf32, #tpu.memory_space<vmem>>, %arg5: memref<8x1xi32, #tpu.memory_space<vmem>>, %arg6: memref<8x1xi32, #tpu.memory_space<vmem>>, %arg7: memref<1x8x128xf32, #tpu.memory_space<vmem>>, %arg8: memref<8x1xf32, #tpu.memory_space<vmem>>, %arg9: memref<8x1xf32, #tpu.memory_space<vmem>>, %arg10: memref<8x1xf32, #tpu.memory_space<vmem>>) attributes {dimension_semantics = [#tpu.dimension_semantics<parallel>, #tpu.dimension_semantics<arbitrary>], iteration_bounds = array<i64: 2, 2>, scalar_prefetch = 0 : i64, scratch_operands = 3 : i64, tpu.core_type = #tpu.core_type<tc>, window_params = [{transform_indices = @transform_0, window_bounds = array<i64: 8, 1>}, {transform_indices = @transform_1, window_bounds = array<i64: 8, 16>}, {transform_indices = @transform_2, window_bounds = array<i64: 8, 16>}, {transform_indices = @transform_3, window_bounds = array<i64: 8, 1>}, {transform_indices = @transform_4, window_bounds = array<i64: 8, 1>}, {transform_indices = @transform_5, window_bounds = array<i64: 1, 8, 128>}]} {
    %c0_i32 = arith.constant 0 : i32
    %0 = arith.cmpi eq, %arg1, %c0_i32 : i32
    %1 = arith.extui %0 : i1 to i32
    %c0_i32_0 = arith.constant 0 : i32
    %2 = arith.cmpi ne, %1, %c0_i32_0 : i32
    scf.if %2 {
      %cst_33 = arith.constant 0.000000e+00 : f32
      %69 = vector.broadcast %cst_33 : f32 to vector<8x1xf32>
      %c0_34 = arith.constant 0 : index
      %c0_35 = arith.constant 0 : index
      %70 = vector.load %arg8[%c0_34, %c0_35] : memref<8x1xf32, #tpu.memory_space<vmem>>, vector<8x1xf32>
      tpu.vector_store %arg8[%c0_34, %c0_35], %69 {strides = array<i32>} : memref<8x1xf32, #tpu.memory_space<vmem>>, vector<8x1xf32>,
      %cst_36 = arith.constant 0.000000e+00 : f32
      %71 = vector.broadcast %cst_36 : f32 to vector<8x1xf32>
      %c0_37 = arith.constant 0 : index
      %c0_38 = arith.constant 0 : index
      %72 = vector.load %arg9[%c0_37, %c0_38] : memref<8x1xf32, #tpu.memory_space<vmem>>, vector<8x1xf32>
      tpu.vector_store %arg9[%c0_37, %c0_38], %71 {strides = array<i32>} : memref<8x1xf32, #tpu.memory_space<vmem>>, vector<8x1xf32>,
      %cst_39 = arith.constant 0.000000e+00 : f32
      %73 = vector.broadcast %cst_39 : f32 to vector<8x1xf32>
      %c0_40 = arith.constant 0 : index
      %c0_41 = arith.constant 0 : index
      %74 = vector.load %arg10[%c0_40, %c0_41] : memref<8x1xf32, #tpu.memory_space<vmem>>, vector<8x1xf32>
      tpu.vector_store %arg10[%c0_40, %c0_41], %73 {strides = array<i32>} : memref<8x1xf32, #tpu.memory_space<vmem>>, vector<8x1xf32>,
    } else {
    }
    %c2_i32 = arith.constant 2 : i32
    %3 = arith.muli %arg0, %c2_i32 : i32
    %4 = arith.addi %3, %arg1 : i32
    %c8_i32 = arith.constant 8 : i32
    %5 = arith.muli %4, %c8_i32 : i32
    %6 = tpu.iota {dimensions = array<i32: 0>} : vector<8x1xi32>
    %7 = vector.broadcast %5 : i32 to vector<8x1xi32>
    %8 = arith.addi %7, %6 : vector<8x1xi32>
    %c20_i32 = arith.constant 20 : i32
    %9 = vector.broadcast %c20_i32 : i32 to vector<8x1xi32>
    %10 = arith.cmpi slt, %8, %9 : vector<8x1xi32>
    %11 = tpu.iota {dimensions = array<i32: 1>} : vector<1x16xi32>
    %c0 = arith.constant 0 : index
    %c0_1 = arith.constant 0 : index
    %12 = vector.load %arg8[%c0, %c0_1] : memref<8x1xf32, #tpu.memory_space<vmem>>, vector<8x1xf32>
    %c0_2 = arith.constant 0 : index
    %c0_3 = arith.constant 0 : index
    %13 = vector.load %arg3[%c0_2, %c0_3] : memref<8x16xf32, #tpu.memory_space<vmem>>, vector<8x16xf32>
    %c0_4 = arith.constant 0 : index
    %c0_5 = arith.constant 0 : index
    %14 = vector.load %arg5[%c0_4, %c0_5] : memref<8x1xi32, #tpu.memory_space<vmem>>, vector<8x1xi32>
    %cst = arith.constant dense<0xFF800000> : vector<8xf32>
    %15 = vector.multi_reduction <maximumf>, %13, %cst [1] : vector<8x16xf32> to vector<8xf32>
    %16 = vector.shape_cast %15 : vector<8xf32> to vector<8x1xf32>
    %17 = vector.broadcast %16 : vector<8x1xf32> to vector<8x16xf32>
    %18 = arith.subf %13, %17 : vector<8x16xf32>
    %19 = math.exp %18 : vector<8x16xf32>
    %cst_6 = arith.constant dense<0.000000e+00> : vector<8xf32>
    %20 = vector.multi_reduction <add>, %19, %cst_6 [1] : vector<8x16xf32> to vector<8xf32>
    %21 = vector.shape_cast %20 : vector<8xf32> to vector<8x1xf32>
    %22 = math.log %21 : vector<8x1xf32>
    %23 = arith.addf %16, %22 : vector<8x1xf32>
    %24 = vector.broadcast %11 : vector<1x16xi32> to vector<8x16xi32>
    %25 = vector.broadcast %14 : vector<8x1xi32> to vector<8x16xi32>
    %26 = arith.cmpi eq, %24, %25 : vector<8x16xi32>
    %cst_7 = arith.constant 0.000000e+00 : f32
    %27 = vector.broadcast %cst_7 : f32 to vector<8x16xf32>
    %28 = arith.select %26, %13, %27 : vector<8x16xi1>, vector<8x16xf32>
    %cst_8 = arith.constant dense<0.000000e+00> : vector<8xf32>
    %29 = vector.multi_reduction <add>, %28, %cst_8 [1] : vector<8x16xf32> to vector<8xf32>
    %30 = vector.shape_cast %29 : vector<8xf32> to vector<8x1xf32>
    %31 = arith.subf %23, %30 : vector<8x1xf32>
    %cst_9 = arith.constant 0.000000e+00 : f32
    %32 = vector.broadcast %cst_9 : f32 to vector<8x1xf32>
    %33 = arith.select %10, %31, %32 : vector<8x1xi1>, vector<8x1xf32>
    %34 = arith.addf %12, %33 : vector<8x1xf32>
    %c0_10 = arith.constant 0 : index
    %c0_11 = arith.constant 0 : index
    %35 = vector.load %arg8[%c0_10, %c0_11] : memref<8x1xf32, #tpu.memory_space<vmem>>, vector<8x1xf32>
    tpu.vector_store %arg8[%c0_10, %c0_11], %34 {strides = array<i32>} : memref<8x1xf32, #tpu.memory_space<vmem>>, vector<8x1xf32>,
    %c0_12 = arith.constant 0 : index
    %c0_13 = arith.constant 0 : index
    %36 = vector.load %arg9[%c0_12, %c0_13] : memref<8x1xf32, #tpu.memory_space<vmem>>, vector<8x1xf32>
    %c0_14 = arith.constant 0 : index
    %c0_15 = arith.constant 0 : index
    %37 = vector.load %arg4[%c0_14, %c0_15] : memref<8x16xf32, #tpu.memory_space<vmem>>, vector<8x16xf32>
    %c0_16 = arith.constant 0 : index
    %c0_17 = arith.constant 0 : index
    %38 = vector.load %arg6[%c0_16, %c0_17] : memref<8x1xi32, #tpu.memory_space<vmem>>, vector<8x1xi32>
    %cst_18 = arith.constant dense<0xFF800000> : vector<8xf32>
    %39 = vector.multi_reduction <maximumf>, %37, %cst_18 [1] : vector<8x16xf32> to vector<8xf32>
    %40 = vector.shape_cast %39 : vector<8xf32> to vector<8x1xf32>
    %41 = vector.broadcast %40 : vector<8x1xf32> to vector<8x16xf32>
    %42 = arith.subf %37, %41 : vector<8x16xf32>
    %43 = math.exp %42 : vector<8x16xf32>
    %cst_19 = arith.constant dense<0.000000e+00> : vector<8xf32>
    %44 = vector.multi_reduction <add>, %43, %cst_19 [1] : vector<8x16xf32> to vector<8xf32>
    %45 = vector.shape_cast %44 : vector<8xf32> to vector<8x1xf32>
    %46 = math.log %45 : vector<8x1xf32>
    %47 = arith.addf %40, %46 : vector<8x1xf32>
    %48 = vector.broadcast %11 : vector<1x16xi32> to vector<8x16xi32>
    %49 = vector.broadcast %38 : vector<8x1xi32> to vector<8x16xi32>
    %50 = arith.cmpi eq, %48, %49 : vector<8x16xi32>
    %cst_20 = arith.constant 0.000000e+00 : f32
    %51 = vector.broadcast %cst_20 : f32 to vector<8x16xf32>
    %52 = arith.select %50, %37, %51 : vector<8x16xi1>, vector<8x16xf32>
    %cst_21 = arith.constant dense<0.000000e+00> : vector<8xf32>
    %53 = vector.multi_reduction <add>, %52, %cst_21 [1] : vector<8x16xf32> to vector<8xf32>
    %54 = vector.shape_cast %53 : vector<8xf32> to vector<8x1xf32>
    %55 = arith.subf %47, %54 : vector<8x1xf32>
    %cst_22 = arith.constant 0.000000e+00 : f32
    %56 = vector.broadcast %cst_22 : f32 to vector<8x1xf32>
    %57 = arith.select %10, %55, %56 : vector<8x1xi1>, vector<8x1xf32>
    %58 = arith.addf %36, %57 : vector<8x1xf32>
    %c0_23 = arith.constant 0 : index
    %c0_24 = arith.constant 0 : index
    %59 = vector.load %arg9[%c0_23, %c0_24] : memref<8x1xf32, #tpu.memory_space<vmem>>, vector<8x1xf32>
    tpu.vector_store %arg9[%c0_23, %c0_24], %58 {strides = array<i32>} : memref<8x1xf32, #tpu.memory_space<vmem>>, vector<8x1xf32>,
    %c0_25 = arith.constant 0 : index
    %c0_26 = arith.constant 0 : index
    %60 = vector.load %arg10[%c0_25, %c0_26] : memref<8x1xf32, #tpu.memory_space<vmem>>, vector<8x1xf32>
    %c0_27 = arith.constant 0 : index
    %c0_28 = arith.constant 0 : index
    %61 = vector.load %arg2[%c0_27, %c0_28] : memref<8x1xf32, #tpu.memory_space<vmem>>, vector<8x1xf32>
    %cst_29 = arith.constant 0.000000e+00 : f32
    %62 = vector.broadcast %cst_29 : f32 to vector<8x1xf32>
    %63 = arith.select %10, %61, %62 : vector<8x1xi1>, vector<8x1xf32>
    %64 = arith.addf %60, %63 : vector<8x1xf32>
    %c0_30 = arith.constant 0 : index
    %c0_31 = arith.constant 0 : index
    %65 = vector.load %arg10[%c0_30, %c0_31] : memref<8x1xf32, #tpu.memory_space<vmem>>, vector<8x1xf32>
    tpu.vector_store %arg10[%c0_30, %c0_31], %64 {strides = array<i32>} : memref<8x1xf32, #tpu.memory_space<vmem>>, vector<8x1xf32>,
    %c1_i32 = arith.constant 1 : i32
    %66 = arith.cmpi eq, %arg1, %c1_i32 : i32
    %67 = arith.extui %66 : i1 to i32
    %c0_i32_32 = arith.constant 0 : i32
    %68 = arith.cmpi ne, %67, %c0_i32_32 : i32
    scf.if %68 {
      %c0_33 = arith.constant 0 : index
      %c0_34 = arith.constant 0 : index
      %69 = vector.load %arg8[%c0_33, %c0_34] : memref<8x1xf32, #tpu.memory_space<vmem>>, vector<8x1xf32>
      %70 = vector.shape_cast %69 : vector<8x1xf32> to vector<1x8x1xf32>
      %cst_35 = arith.constant dense<0.000000e+00> : vector<1xf32>
      %71 = vector.multi_reduction <add>, %70, %cst_35 [1, 2] : vector<1x8x1xf32> to vector<1xf32>
      %72 = vector.shape_cast %71 : vector<1xf32> to vector<1x1x1xf32>
      %73 = vector.extract %72[0, 0, 0] : f32 from vector<1x1x1xf32>
      %c0_36 = arith.constant 0 : index
      %c0_37 = arith.constant 0 : index
      %74 = vector.load %arg9[%c0_36, %c0_37] : memref<8x1xf32, #tpu.memory_space<vmem>>, vector<8x1xf32>
      %75 = vector.shape_cast %74 : vector<8x1xf32> to vector<1x8x1xf32>
      %cst_38 = arith.constant dense<0.000000e+00> : vector<1xf32>
      %76 = vector.multi_reduction <add>, %75, %cst_38 [1, 2] : vector<1x8x1xf32> to vector<1xf32>
      %77 = vector.shape_cast %76 : vector<1xf32> to vector<1x1x1xf32>
      %78 = vector.extract %77[0, 0, 0] : f32 from vector<1x1x1xf32>
      %c0_39 = arith.constant 0 : index
      %c0_40 = arith.constant 0 : index
      %79 = vector.load %arg10[%c0_39, %c0_40] : memref<8x1xf32, #tpu.memory_space<vmem>>, vector<8x1xf32>
      %80 = vector.shape_cast %79 : vector<8x1xf32> to vector<1x8x1xf32>
      %cst_41 = arith.constant dense<0.000000e+00> : vector<1xf32>
      %81 = vector.multi_reduction <add>, %80, %cst_41 [1, 2] : vector<1x8x1xf32> to vector<1xf32>
      %82 = vector.shape_cast %81 : vector<1xf32> to vector<1x1x1xf32>
      %83 = vector.extract %82[0, 0, 0] : f32 from vector<1x1x1xf32>
      %84 = tpu.iota {dimensions = array<i32: 2>} : vector<1x8x128xi32>
      %c0_i32_42 = arith.constant 0 : i32
      %85 = vector.broadcast %c0_i32_42 : i32 to vector<1x8x128xi32>
      %86 = arith.cmpi eq, %84, %85 : vector<1x8x128xi32>
      %c1_i32_43 = arith.constant 1 : i32
      %87 = vector.broadcast %c1_i32_43 : i32 to vector<1x8x128xi32>
      %88 = arith.cmpi eq, %84, %87 : vector<1x8x128xi32>
      %c2_i32_44 = arith.constant 2 : i32
      %89 = vector.broadcast %c2_i32_44 : i32 to vector<1x8x128xi32>
      %90 = arith.cmpi eq, %84, %89 : vector<1x8x128xi32>
      %cst_45 = arith.constant 0.000000e+00 : f32
      %91 = vector.broadcast %83 : f32 to vector<1x8x128xf32>
      %92 = vector.broadcast %cst_45 : f32 to vector<1x8x128xf32>
      %93 = arith.select %90, %91, %92 : vector<1x8x128xi1>, vector<1x8x128xf32>
      %94 = vector.broadcast %78 : f32 to vector<1x8x128xf32>
      %95 = arith.select %88, %94, %93 : vector<1x8x128xi1>, vector<1x8x128xf32>
      %96 = vector.broadcast %73 : f32 to vector<1x8x128xf32>
      %97 = arith.select %86, %96, %95 : vector<1x8x128xi1>, vector<1x8x128xf32>
      %c0_46 = arith.constant 0 : index
      %c0_47 = arith.constant 0 : index
      %c0_48 = arith.constant 0 : index
      %98 = vector.load %arg7[%c0_46, %c0_47, %c0_48] : memref<1x8x128xf32, #tpu.memory_space<vmem>>, vector<1x8x128xf32>
      tpu.vector_store %arg7[%c0_46, %c0_47, %c0_48], %97 {strides = array<i32>} : memref<1x8x128xf32, #tpu.memory_space<vmem>>, vector<1x8x128xf32>,
    } else {
    }
    return
  }
  func.func @transform_0(%arg0: i32, %arg1: i32) -> (i32, i32) {
    %c2_i32 = arith.constant 2 : i32
    %0 = arith.muli %arg0, %c2_i32 : i32
    %1 = arith.addi %0, %arg1 : i32
    %c2_i32_0 = arith.constant 2 : i32
    %2 = arith.minsi %1, %c2_i32_0 : i32
    %c0_i32 = arith.constant 0 : i32
    %c0_i32_1 = arith.constant 0 : i32
    return %2, %c0_i32 : i32, i32
  }
  func.func @transform_1(%arg0: i32, %arg1: i32) -> (i32, i32) {
    %c2_i32 = arith.constant 2 : i32
    %0 = arith.muli %arg0, %c2_i32 : i32
    %1 = arith.addi %0, %arg1 : i32
    %c2_i32_0 = arith.constant 2 : i32
    %2 = arith.minsi %1, %c2_i32_0 : i32
    %c0_i32 = arith.constant 0 : i32
    %c0_i32_1 = arith.constant 0 : i32
    return %2, %c0_i32 : i32, i32
  }
  func.func @transform_2(%arg0: i32, %arg1: i32) -> (i32, i32) {
    %c2_i32 = arith.constant 2 : i32
    %0 = arith.muli %arg0, %c2_i32 : i32
    %1 = arith.addi %0, %arg1 : i32
    %c2_i32_0 = arith.constant 2 : i32
    %2 = arith.minsi %1, %c2_i32_0 : i32
    %c0_i32 = arith.constant 0 : i32
    %c0_i32_1 = arith.constant 0 : i32
    return %2, %c0_i32 : i32, i32
  }
  func.func @transform_3(%arg0: i32, %arg1: i32) -> (i32, i32) {
    %c2_i32 = arith.constant 2 : i32
    %0 = arith.muli %arg0, %c2_i32 : i32
    %1 = arith.addi %0, %arg1 : i32
    %c2_i32_0 = arith.constant 2 : i32
    %2 = arith.minsi %1, %c2_i32_0 : i32
    %c0_i32 = arith.constant 0 : i32
    %c0_i32_1 = arith.constant 0 : i32
    return %2, %c0_i32 : i32, i32
  }
  func.func @transform_4(%arg0: i32, %arg1: i32) -> (i32, i32) {
    %c2_i32 = arith.constant 2 : i32
    %0 = arith.muli %arg0, %c2_i32 : i32
    %1 = arith.addi %0, %arg1 : i32
    %c2_i32_0 = arith.constant 2 : i32
    %2 = arith.minsi %1, %c2_i32_0 : i32
    %c0_i32 = arith.constant 0 : i32
    %c0_i32_1 = arith.constant 0 : i32
    return %2, %c0_i32 : i32, i32
  }
  func.func @transform_5(%arg0: i32, %arg1: i32) -> (i32, i32, i32) {
    %c0_i32 = arith.constant 0 : i32
    %c0_i32_0 = arith.constant 0 : i32
    %c0_i32_1 = arith.constant 0 : i32
    return %arg0, %c0_i32, %c0_i32_0 : i32, i32, i32
  }
}

</mosaic_0001>

<llo_original>
// kernel: tpu_custom_call.1
$region0: #{tpu_custom_call.1}
  #allocation0 [shape = 'u32[]', space=smem, size = 0x4, offset = 0x4, fixed_abs, tag = 'smem constant byte address 0x4 - core index']
  #allocation1 [shape = 'u32[72,128]{1,0:T(1,128)}', space=vmem, size = 0x9000, scoped, tag = 'internal scratch']
  #allocation2 [shape = 'f32[8,1]{1,0:T(8,128)}', space=vmem, size = 0x1000, scoped, tag = 'scratch operand']
  #allocation3 [shape = 'f32[8,1]{1,0:T(8,128)}', space=vmem, size = 0x1000, scoped, tag = 'scratch operand']
  #allocation4 [shape = 'f32[8,1]{1,0:T(8,128)}', space=vmem, size = 0x1000, scoped, tag = 'scratch operand']
  %s0 = inlined_call_operand.vmem [shape: f32[20,1], index: 0, kind: input, shape index: {}]
  %s1 = inlined_call_operand.vmem [shape: f32[20,16], index: 1, kind: input, shape index: {}]
  %s2 = inlined_call_operand.vmem [shape: f32[20,16], index: 2, kind: input, shape index: {}]
  %s3 = inlined_call_operand.vmem [shape: s32[20,1], index: 3, kind: input, shape index: {}]
  %s4 = inlined_call_operand.vmem [shape: s32[20,1], index: 4, kind: input, shape index: {}]
  %s5 = inlined_call_operand.hbm [shape: f32[2,8,128], index: 5, kind: output, shape index: {}]
  %s6 = sld [smem:[#allocation0]]
  $region61: #{tpu_custom_call.1} parent=0
    _
  %s8 = ssub.s32 1, %s6
  %s9 = scalar_select 0, %s8, %s6
  $region1: #{tpu_custom_call.1} parent=0
    #allocation5 [shape = 'u8[8192]{0}', space=vmem, size = 0x2000, scoped, tag = 'output window, operand 0']
    #allocation6 [shape = 's32[2]{0}', space=sflag, size = 0x8, scoped, tag = 'scoped memory for tpu_custom_call.1']
    %10 = vsyncpa [#allocation6], 0
    %s11 = scalar_lea.sflag [#allocation6], 1
    %12 = vsyncpa %s11, 0
    loop: start=0, step=1, limit=6
    $region2: #{tpu_custom_call.1} parent=1 // loop_pre_header
      _
    $region3: #{tpu_custom_call.1} parent=1 // loop_header
      %s14 = sphi 0, %s18
      %p15 = scmp.ge.s32.totalorder %s14, 6
      %s21 = sphi 0, %s33
      %s22 = sphi 0, %s29
      %s23 = sphi 0, %s21
      %s24 = sphi 0, %s22
      %s25 = sphi 0, %s23
      %s26 = sphi 0, %s24
      %s44 = sphi 0, %s46
      %s47 = sphi 0, %s44
      %s48 = sphi 0, %s47
      %s64 = sphi 0, %s48
      %s78 = sphi 0, %s80
      %s81 = sphi 0, %s78
      %s82 = sphi 0, %s81
      %s98 = sphi 0, %s82
      %s112 = sphi 0, %s114
      %s115 = sphi 0, %s112
      %s116 = sphi 0, %s115
      %s132 = sphi 0, %s116
      %s146 = sphi 0, %s148
      %s149 = sphi 0, %s146
      %s150 = sphi 0, %s149
      %s166 = sphi 0, %s150
      %s180 = sphi 0, %s182
      %s183 = sphi 0, %s180
      %s184 = sphi 0, %s183
      %s200 = sphi 0, %s184
      %s206 = sphi 0, %s208
      %s209 = sphi 0, %s206
      %s210 = sphi 0, %s209
      %s226 = sphi 0, %s210
    $region4: #{tpu_custom_call.1} parent=1 // loop_header_branch
      %17 = sbr.rel (%p15) target = $region8
    $region5: #{tpu_custom_call.1} parent=1 // loop_body
      %s19 = ssub.s32 %s14, 1
      %s20 = ssub.s32 %s14, 2
      %s27 = sadd.s32 1, %s22
      %p28 = scmp.ge.s32.totalorder %s27, 2
      %s29 = scalar_select %p28, 0, %s27
      %s30 = sadd.s32 1, %s21
      %s31 = scalar_select %p28, %s30, %s21
      %p32 = scmp.ge.s32.totalorder %s31, 2
      %s33 = scalar_select %p32, 0, %s31
      %s34 = smul.u32 %s21, 2
      %s35 = sadd.s32 %s34, %s22
      %p36 = scmp.lt.s32.totalorder %s35, 2
      %s37 = scalar_select %p36, %s35, 2
      %s38 = smul.u32 %s33, 2
      %s39 = sadd.s32 %s38, %s29
      %p40 = scmp.lt.s32.totalorder %s39, 2
      %s41 = scalar_select %p40, %s39, 2
      %s42 = ssub.s32 %s37, %s41
      %p43 = scmp.eq.s32.totalorder %s42, 0
      %s45 = sadd.s32 %s44, 1
      %s46 = scalar_select %p43, %s44, %s45
      %p49 = pneg %p43
      %p50 = scmp.eq.s32.totalorder %s14, 3
      %p51 = por %p49, %p50
      %p52 = scmp.ne.s32.totalorder %s44, %s47
      %p53 = scmp.eq.s32.totalorder %s14, 0
      %p54 = por %p52, %p53
      %p55 = scmp.ne.s32.totalorder %s44, %s47
      %p56 = scmp.eq.s32.totalorder %s19, 3
      %p57 = por %p55, %p56
      %p58 = scmp.ne.s32.totalorder %s47, %s48
      %p59 = scmp.eq.s32.totalorder %s19, 0
      %p60 = por %p58, %p59
      %p61 = scmp.ne.s32.totalorder %s47, %s48
      %p62 = scmp.eq.s32.totalorder %s20, 3
      %p63 = por %p61, %p62
      %p65 = scmp.ne.s32.totalorder %s48, %s64
      %p66 = scmp.eq.s32.totalorder %s20, 0
      %p67 = por %p65, %p66
      %s68 = smul.u32 %s21, 2
      %s69 = sadd.s32 %s68, %s22
      %p70 = scmp.lt.s32.totalorder %s69, 2
      %s71 = scalar_select %p70, %s69, 2
      %s72 = smul.u32 %s33, 2
      %s73 = sadd.s32 %s72, %s29
      %p74 = scmp.lt.s32.totalorder %s73, 2
      %s75 = scalar_select %p74, %s73, 2
      %s76 = ssub.s32 %s71, %s75
      %p77 = scmp.eq.s32.totalorder %s76, 0
      %s79 = sadd.s32 %s78, 1
      %s80 = scalar_select %p77, %s78, %s79
      %p83 = pneg %p77
      %p84 = scmp.eq.s32.totalorder %s14, 3
      %p85 = por %p83, %p84
      %p86 = scmp.ne.s32.totalorder %s78, %s81
      %p87 = scmp.eq.s32.totalorder %s14, 0
      %p88 = por %p86, %p87
      %p89 = scmp.ne.s32.totalorder %s78, %s81
      %p90 = scmp.eq.s32.totalorder %s19, 3
      %p91 = por %p89, %p90
      %p92 = scmp.ne.s32.totalorder %s81, %s82
      %p93 = scmp.eq.s32.totalorder %s19, 0
      %p94 = por %p92, %p93
      %p95 = scmp.ne.s32.totalorder %s81, %s82
      %p96 = scmp.eq.s32.totalorder %s20, 3
      %p97 = por %p95, %p96
      %p99 = scmp.ne.s32.totalorder %s82, %s98
      %p100 = scmp.eq.s32.totalorder %s20, 0
      %p101 = por %p99, %p100
      %s102 = smul.u32 %s21, 2
      %s103 = sadd.s32 %s102, %s22
      %p104 = scmp.lt.s32.totalorder %s103, 2
      %s105 = scalar_select %p104, %s103, 2
      %s106 = smul.u32 %s33, 2
      %s107 = sadd.s32 %s106, %s29
      %p108 = scmp.lt.s32.totalorder %s107, 2
      %s109 = scalar_select %p108, %s107, 2
      %s110 = ssub.s32 %s105, %s109
      %p111 = scmp.eq.s32.totalorder %s110, 0
      %s113 = sadd.s32 %s112, 1
      %s114 = scalar_select %p111, %s112, %s113
      %p117 = pneg %p111
      %p118 = scmp.eq.s32.totalorder %s14, 3
      %p119 = por %p117, %p118
      %p120 = scmp.ne.s32.totalorder %s112, %s115
      %p121 = scmp.eq.s32.totalorder %s14, 0
      %p122 = por %p120, %p121
      %p123 = scmp.ne.s32.totalorder %s112, %s115
      %p124 = scmp.eq.s32.totalorder %s19, 3
      %p125 = por %p123, %p124
      %p126 = scmp.ne.s32.totalorder %s115, %s116
      %p127 = scmp.eq.s32.totalorder %s19, 0
      %p128 = por %p126, %p127
      %p129 = scmp.ne.s32.totalorder %s115, %s116
      %p130 = scmp.eq.s32.totalorder %s20, 3
      %p131 = por %p129, %p130
      %p133 = scmp.ne.s32.totalorder %s116, %s132
      %p134 = scmp.eq.s32.totalorder %s20, 0
      %p135 = por %p133, %p134
      %s136 = smul.u32 %s21, 2
      %s137 = sadd.s32 %s136, %s22
      %p138 = scmp.lt.s32.totalorder %s137, 2
      %s139 = scalar_select %p138, %s137, 2
      %s140 = smul.u32 %s33, 2
      %s141 = sadd.s32 %s140, %s29
      %p142 = scmp.lt.s32.totalorder %s141, 2
      %s143 = scalar_select %p142, %s141, 2
      %s144 = ssub.s32 %s139, %s143
      %p145 = scmp.eq.s32.totalorder %s144, 0
      %s147 = sadd.s32 %s146, 1
      %s148 = scalar_select %p145, %s146, %s147
      %p151 = pneg %p145
      %p152 = scmp.eq.s32.totalorder %s14, 3
      %p153 = por %p151, %p152
      %p154 = scmp.ne.s32.totalorder %s146, %s149
      %p155 = scmp.eq.s32.totalorder %s14, 0
      %p156 = por %p154, %p155
      %p157 = scmp.ne.s32.totalorder %s146, %s149
      %p158 = scmp.eq.s32.totalorder %s19, 3
      %p159 = por %p157, %p158
      %p160 = scmp.ne.s32.totalorder %s149, %s150
      %p161 = scmp.eq.s32.totalorder %s19, 0
      %p162 = por %p160, %p161
      %p163 = scmp.ne.s32.totalorder %s149, %s150
      %p164 = scmp.eq.s32.totalorder %s20, 3
      %p165 = por %p163, %p164
      %p167 = scmp.ne.s32.totalorder %s150, %s166
      %p168 = scmp.eq.s32.totalorder %s20, 0
      %p169 = por %p167, %p168
      %s170 = smul.u32 %s21, 2
      %s171 = sadd.s32 %s170, %s22
      %p172 = scmp.lt.s32.totalorder %s171, 2
      %s173 = scalar_select %p172, %s171, 2
      %s174 = smul.u32 %s33, 2
      %s175 = sadd.s32 %s174, %s29
      %p176 = scmp.lt.s32.totalorder %s175, 2
      %s177 = scalar_select %p176, %s175, 2
      %s178 = ssub.s32 %s173, %s177
      %p179 = scmp.eq.s32.totalorder %s178, 0
      %s181 = sadd.s32 %s180, 1
      %s182 = scalar_select %p179, %s180, %s181
      %p185 = pneg %p179
      %p186 = scmp.eq.s32.totalorder %s14, 3
      %p187 = por %p185, %p186
      %p188 = scmp.ne.s32.totalorder %s180, %s183
      %p189 = scmp.eq.s32.totalorder %s14, 0
      %p190 = por %p188, %p189
      %p191 = scmp.ne.s32.totalorder %s180, %s183
      %p192 = scmp.eq.s32.totalorder %s19, 3
      %p193 = por %p191, %p192
      %p194 = scmp.ne.s32.totalorder %s183, %s184
      %p195 = scmp.eq.s32.totalorder %s19, 0
      %p196 = por %p194, %p195
      %p197 = scmp.ne.s32.totalorder %s183, %s184
      %p198 = scmp.eq.s32.totalorder %s20, 3
      %p199 = por %p197, %p198
      %p201 = scmp.ne.s32.totalorder %s184, %s200
      %p202 = scmp.eq.s32.totalorder %s20, 0
      %p203 = por %p201, %p202
      %s204 = ssub.s32 %s21, %s33
      %p205 = scmp.eq.s32.totalorder %s204, 0
      %s207 = sadd.s32 %s206, 1
      %s208 = scalar_select %p205, %s206, %s207
      %p211 = pneg %p205
      %p212 = scmp.eq.s32.totalorder %s14, 3
      %p213 = por %p211, %p212
      %p214 = scmp.ne.s32.totalorder %s206, %s209
      %p215 = scmp.eq.s32.totalorder %s14, 0
      %p216 = por %p214, %p215
      %p217 = scmp.ne.s32.totalorder %s206, %s209
      %p218 = scmp.eq.s32.totalorder %s19, 3
      %p219 = por %p217, %p218
      %p220 = scmp.ne.s32.totalorder %s209, %s210
      %p221 = scmp.eq.s32.totalorder %s19, 0
      %p222 = por %p220, %p221
      %p223 = scmp.ne.s32.totalorder %s209, %s210
      %p224 = scmp.eq.s32.totalorder %s20, 3
      %p225 = por %p223, %p224
      %p227 = scmp.ne.s32.totalorder %s210, %s226
      %p228 = scmp.eq.s32.totalorder %s20, 0
      %p229 = por %p227, %p228
      %p230 = scmp.le.s32.totalorder 1, %s14
      %p231 = scmp.lt.s32.totalorder %s14, 5
      %p232 = pnand %p230, %p231
      %p233 = pneg %p232
      // Predicated region
      $region9: #{tpu_custom_call.1} parent=5 // pred_check
        _
      $region10: #{tpu_custom_call.1} parent=5 // pred_check_branch
        %235 = sbr.rel (%p232) target = $region12
      $region11: #{tpu_custom_call.1} parent=5 // pred_region
        %s236 = ssub.s32 %s14, 1
      $region12: #{tpu_custom_call.1} parent=5 // pred_fallthru
        _
      %p237 = scmp.lt.s32.totalorder %s14, 4
      // Predicated region
      $region13: #{tpu_custom_call.1} parent=5 // pred_check
        %p238 = pneg %p237
      $region14: #{tpu_custom_call.1} parent=5 // pred_check_branch
        %240 = sbr.rel (%p238) target = $region16
      $region15: #{tpu_custom_call.1} parent=5 // pred_region
        // Predicated region
        $region17: #{tpu_custom_call.1} parent=15 // pred_check
          %p241 = pneg %p54
        $region18: #{tpu_custom_call.1} parent=15 // pred_check_branch
          %243 = sbr.rel (%p241) target = $region20
        $region19: #{tpu_custom_call.1} parent=15 // pred_region
          %s244 = smul.u32 %s21, 2
          %s245 = sadd.s32 %s244, %s22
          %p246 = scmp.lt.s32.totalorder %s245, 2
          %s247 = scalar_select %p246, %s245, 2
          %p248 = scmp.lt.s32.totalorder %s247, 2
          %s249 = scalar_select %p248, %s247, 2
          %s250 = smul.addr %s249, 8
          %s251 = scalar_lea.vmem %s0, %s250
          %s252 = smul.u32 %s21, 2
          %s253 = sadd.s32 %s252, %s22
          %p254 = scmp.lt.s32.totalorder %s253, 2
          %s255 = scalar_select %p254, %s253, 2
        $region20: #{tpu_custom_call.1} parent=15 // pred_fallthru
          _
        // Predicated region
        $region21: #{tpu_custom_call.1} parent=15 // pred_check
          %p256 = pneg %p88
        $region22: #{tpu_custom_call.1} parent=15 // pred_check_branch
          %258 = sbr.rel (%p256) target = $region24
        $region23: #{tpu_custom_call.1} parent=15 // pred_region
          %s259 = smul.u32 %s21, 2
          %s260 = sadd.s32 %s259, %s22
          %p261 = scmp.lt.s32.totalorder %s260, 2
          %s262 = scalar_select %p261, %s260, 2
          %p263 = scmp.lt.s32.totalorder %s262, 2
          %s264 = scalar_select %p263, %s262, 2
          %s265 = smul.addr %s264, 8
          %s266 = scalar_lea.vmem %s1, %s265
          %s267 = smul.u32 %s21, 2
          %s268 = sadd.s32 %s267, %s22
          %p269 = scmp.lt.s32.totalorder %s268, 2
          %s270 = scalar_select %p269, %s268, 2
        $region24: #{tpu_custom_call.1} parent=15 // pred_fallthru
          _
        // Predicated region
        $region25: #{tpu_custom_call.1} parent=15 // pred_check
          %p271 = pneg %p122
        $region26: #{tpu_custom_call.1} parent=15 // pred_check_branch
          %273 = sbr.rel (%p271) target = $region28
        $region27: #{tpu_custom_call.1} parent=15 // pred_region
          %s274 = smul.u32 %s21, 2
          %s275 = sadd.s32 %s274, %s22
          %p276 = scmp.lt.s32.totalorder %s275, 2
          %s277 = scalar_select %p276, %s275, 2
          %p278 = scmp.lt.s32.totalorder %s277, 2
          %s279 = scalar_select %p278, %s277, 2
          %s280 = smul.addr %s279, 8
          %s281 = scalar_lea.vmem %s2, %s280
          %s282 = smul.u32 %s21, 2
          %s283 = sadd.s32 %s282, %s22
          %p284 = scmp.lt.s32.totalorder %s283, 2
          %s285 = scalar_select %p284, %s283, 2
        $region28: #{tpu_custom_call.1} parent=15 // pred_fallthru
          _
        // Predicated region
        $region29: #{tpu_custom_call.1} parent=15 // pred_check
          %p286 = pneg %p156
        $region30: #{tpu_custom_call.1} parent=15 // pred_check_branch
          %288 = sbr.rel (%p286) target = $region32
        $region31: #{tpu_custom_call.1} parent=15 // pred_region
          %s289 = smul.u32 %s21, 2
          %s290 = sadd.s32 %s289, %s22
          %p291 = scmp.lt.s32.totalorder %s290, 2
          %s292 = scalar_select %p291, %s290, 2
          %p293 = scmp.lt.s32.totalorder %s292, 2
          %s294 = scalar_select %p293, %s292, 2
          %s295 = smul.addr %s294, 8
          %s296 = scalar_lea.vmem %s3, %s295
          %s297 = smul.u32 %s21, 2
          %s298 = sadd.s32 %s297, %s22
          %p299 = scmp.lt.s32.totalorder %s298, 2
          %s300 = scalar_select %p299, %s298, 2
        $region32: #{tpu_custom_call.1} parent=15 // pred_fallthru
          _
        // Predicated region
        $region33: #{tpu_custom_call.1} parent=15 // pred_check
          %p301 = pneg %p190
        $region34: #{tpu_custom_call.1} parent=15 // pred_check_branch
          %303 = sbr.rel (%p301) target = $region36
        $region35: #{tpu_custom_call.1} parent=15 // pred_region
          %s304 = smul.u32 %s21, 2
          %s305 = sadd.s32 %s304, %s22
          %p306 = scmp.lt.s32.totalorder %s305, 2
          %s307 = scalar_select %p306, %s305, 2
          %p308 = scmp.lt.s32.totalorder %s307, 2
          %s309 = scalar_select %p308, %s307, 2
          %s310 = smul.addr %s309, 8
          %s311 = scalar_lea.vmem %s4, %s310
          %s312 = smul.u32 %s21, 2
          %s313 = sadd.s32 %s312, %s22
          %p314 = scmp.lt.s32.totalorder %s313, 2
          %s315 = scalar_select %p314, %s313, 2
        $region36: #{tpu_custom_call.1} parent=15 // pred_fallthru
          _
      $region16: #{tpu_custom_call.1} parent=5 // pred_fallthru
        _
      %p316 = scmp.le.s32.totalorder 1, %s14
      %p317 = scmp.lt.s32.totalorder %s14, 5
      %p318 = pnand %p316, %p317
      %p319 = pneg %p318
      // Predicated region
      $region37: #{tpu_custom_call.1} parent=5 // pred_check
        _
      $region38: #{tpu_custom_call.1} parent=5 // pred_check_branch
        %321 = sbr.rel (%p318) target = $region40
      $region39: #{tpu_custom_call.1} parent=5 // pred_region
        %s322 = ssub.s32 %s14, 1
        %s323 = smul.u32 %s23, 2
        %s324 = sadd.s32 %s323, %s24
        %p325 = scmp.lt.s32.totalorder %s324, 2
        %s326 = scalar_select %p325, %s324, 2
        %p327 = scmp.lt.s32.totalorder %s326, 2
        %s328 = scalar_select %p327, %s326, 2
        %s329 = smul.addr %s328, 8
        %s330 = scalar_lea.vmem %s0, %s329
        %p331 = pneg %p60
        %p332 = pneg %p57
        %s333 = smul.u32 %s23, 2
        %s334 = sadd.s32 %s333, %s24
        %p335 = scmp.lt.s32.totalorder %s334, 2
        %s336 = scalar_select %p335, %s334, 2
        %p337 = scmp.lt.s32.totalorder %s336, 2
        %s338 = scalar_select %p337, %s336, 2
        %s339 = smul.addr %s338, 8
        %s340 = scalar_lea.vmem %s1, %s339
        %p341 = pneg %p94
        %p342 = pneg %p91
        %s343 = smul.u32 %s23, 2
        %s344 = sadd.s32 %s343, %s24
        %p345 = scmp.lt.s32.totalorder %s344, 2
        %s346 = scalar_select %p345, %s344, 2
        %p347 = scmp.lt.s32.totalorder %s346, 2
        %s348 = scalar_select %p347, %s346, 2
        %s349 = smul.addr %s348, 8
        %s350 = scalar_lea.vmem %s2, %s349
        %p351 = pneg %p128
        %p352 = pneg %p125
        %s353 = smul.u32 %s23, 2
        %s354 = sadd.s32 %s353, %s24
        %p355 = scmp.lt.s32.totalorder %s354, 2
        %s356 = scalar_select %p355, %s354, 2
        %p357 = scmp.lt.s32.totalorder %s356, 2
        %s358 = scalar_select %p357, %s356, 2
        %s359 = smul.addr %s358, 8
        %s360 = scalar_lea.vmem %s3, %s359
        %p361 = pneg %p162
        %p362 = pneg %p159
        %s363 = smul.u32 %s23, 2
        %s364 = sadd.s32 %s363, %s24
        %p365 = scmp.lt.s32.totalorder %s364, 2
        %s366 = scalar_select %p365, %s364, 2
        %p367 = scmp.lt.s32.totalorder %s366, 2
        %s368 = scalar_select %p367, %s366, 2
        %s369 = smul.addr %s368, 8
        %s370 = scalar_lea.vmem %s4, %s369
        %p371 = pneg %p196
        %p372 = pneg %p193
        %p373 = pneg %p222
        %p374 = pneg %p219
        %s375 = sand.u32 %s209, 1
        %s376 = scalar_lea.sflag [#allocation6], %s375
        %s377 = sand.u32 %s209, 1
        %s378 = smul.addr %s377, 8
        %s379 = scalar_lea.vmem [#allocation5], %s378
        %s380 = smul.u32 %s23, 2
        %s381 = sadd.s32 %s380, %s24
        %p382 = scmp.lt.s32.totalorder %s381, 2
        %s383 = scalar_select %p382, %s381, 2
        %p384 = scmp.lt.s32.totalorder %s383, 2
        %s385 = scalar_select %p384, %s383, 2
        %s386 = smul.addr %s385, 8
        %s387 = scalar_lea.vmem %s0, %s386
        %s388 = smul.u32 %s23, 2
        %s389 = sadd.s32 %s388, %s24
        %p390 = scmp.lt.s32.totalorder %s389, 2
        %s391 = scalar_select %p390, %s389, 2
        %s392 = smul.u32 %s23, 2
        %s393 = sadd.s32 %s392, %s24
        %p394 = scmp.lt.s32.totalorder %s393, 2
        %s395 = scalar_select %p394, %s393, 2
        %p396 = scmp.lt.s32.totalorder %s395, 2
        %s397 = scalar_select %p396, %s395, 2
        %s398 = smul.addr %s397, 8
        %s399 = scalar_lea.vmem %s1, %s398
        %s400 = smul.u32 %s23, 2
        %s401 = sadd.s32 %s400, %s24
        %p402 = scmp.lt.s32.totalorder %s401, 2
        %s403 = scalar_select %p402, %s401, 2
        %s404 = smul.u32 %s23, 2
        %s405 = sadd.s32 %s404, %s24
        %p406 = scmp.lt.s32.totalorder %s405, 2
        %s407 = scalar_select %p406, %s405, 2
        %p408 = scmp.lt.s32.totalorder %s407, 2
        %s409 = scalar_select %p408, %s407, 2
        %s410 = smul.addr %s409, 8
        %s411 = scalar_lea.vmem %s2, %s410
        %s412 = smul.u32 %s23, 2
        %s413 = sadd.s32 %s412, %s24
        %p414 = scmp.lt.s32.totalorder %s413, 2
        %s415 = scalar_select %p414, %s413, 2
        %s416 = smul.u32 %s23, 2
        %s417 = sadd.s32 %s416, %s24
        %p418 = scmp.lt.s32.totalorder %s417, 2
        %s419 = scalar_select %p418, %s417, 2
        %p420 = scmp.lt.s32.totalorder %s419, 2
        %s421 = scalar_select %p420, %s419, 2
        %s422 = smul.addr %s421, 8
        %s423 = scalar_lea.vmem %s3, %s422
        %s424 = smul.u32 %s23, 2
        %s425 = sadd.s32 %s424, %s24
        %p426 = scmp.lt.s32.totalorder %s425, 2
        %s427 = scalar_select %p426, %s425, 2
        %s428 = smul.u32 %s23, 2
        %s429 = sadd.s32 %s428, %s24
        %p430 = scmp.lt.s32.totalorder %s429, 2
        %s431 = scalar_select %p430, %s429, 2
        %p432 = scmp.lt.s32.totalorder %s431, 2
        %s433 = scalar_select %p432, %s431, 2
        %s434 = smul.addr %s433, 8
        %s435 = scalar_lea.vmem %s4, %s434
        %s436 = smul.u32 %s23, 2
        %s437 = sadd.s32 %s436, %s24
        %p438 = scmp.lt.s32.totalorder %s437, 2
        %s439 = scalar_select %p438, %s437, 2
        %p440 = scmp.eq.s32.totalorder %s24, 0
        // Predicated region
        $region41: #{tpu_custom_call.1} parent=39 // pred_check
          %p441 = pneg %p440
        $region42: #{tpu_custom_call.1} parent=39 // pred_check_branch
          %443 = sbr.rel (%p441) target = $region44
        $region43: #{tpu_custom_call.1} parent=39 // pred_region
          %vm444 = vcmask 7168
          %445 = vst.msk [vmem:[#allocation2] sm:$0xff] %vm444, 0.0
          %446 = vst.msk [vmem:[#allocation3] sm:$0xff] %vm444, 0.0
          %447 = vst.msk [vmem:[#allocation4] sm:$0xff] %vm444, 0.0
        $region44: #{tpu_custom_call.1} parent=39 // pred_fallthru
          _
        %s448 = smul.u32 %s23, 2
        %s449 = sadd.s32 %s448, %s24
        %s450 = smul.u32 %s449, 8
        %v451 = vlaneseq
        %v452 = vshrl.u32 %v451, 7
        %v453 = vstv %s450
        %v454 = vadd.s32 %v453, %v452
        %vm455 = vcmp.lt.s32.totalorder %v454, 20
        %v456 = vlaneseq
        %v457 = vand.u32 %v456, 127
        %v458 = vld [vmem:[#allocation2] sm:$0xff]
        %v459 = vld [vmem:[%s399] sm:$0xff]
        %v460 = vld [vmem:[%s423] sm:$0xff]
        %vm461 = vcmask 130048
        %v462 = vsel %vm461, %v459, -inf
        %463 = vmax.xlane.f32.xlu0 %v462
        %v464 = vpop.xlane.xlu0 %463
        %v465 = vsub.f32 %v459, %v464
        %v466 = vmul.f32 %v465, 1.442695
        %v467 = vpow.pop %v466
        %v468 = vsel %vm461, %v467, 0.0
        %469 = vadd.xlane.f32.xlu0 %v468
        %v470 = vpop.xlane.xlu0 %469
        %v471 = vlog2.pop %v470
        %v472 = vmul.f32 %v471, 0.6931472
        %v473 = vadd.f32 %v464, %v472
        %474 = vset.pattern.permute.xlu0 0
        %475 = vperm.xlu0 %474, %v460
        %v476 = vpop.permute.xlu0 %475
        %vm477 = vcmp.eq.s32.totalorder %v457, %v476
        %v478 = vsel %vm477, %v459, 0.0
        %v479 = vsel %vm461, %v478, 0.0
        %480 = vadd.xlane.f32.xlu0 %v479
        %v481 = vpop.xlane.xlu0 %480
        %v482 = vsub.f32 %v473, %v481
        %v483 = vsel %vm455, %v482, 0.0
        %v484 = vadd.f32 %v458, %v483
        %vm485 = vcmask 7168
        %486 = vst.msk [vmem:[#allocation2] sm:$0xff] %vm485, %v484
        %v487 = vld [vmem:[#allocation3] sm:$0xff]
        %v488 = vld [vmem:[%s411] sm:$0xff]
        %v489 = vld [vmem:[%s435] sm:$0xff]
        %v490 = vsel %vm461, %v488, -inf
        %491 = vmax.xlane.f32.xlu0 %v490
        %v492 = vpop.xlane.xlu0 %491
        %v493 = vsub.f32 %v488, %v492
        %v494 = vmul.f32 %v493, 1.442695
        %v495 = vpow.pop %v494
        %v496 = vsel %vm461, %v495, 0.0
        %497 = vadd.xlane.f32.xlu0 %v496
        %v498 = vpop.xlane.xlu0 %497
        %v499 = vlog2.pop %v498
        %v500 = vmul.f32 %v499, 0.6931472
        %v501 = vadd.f32 %v492, %v500
        %502 = vset.pattern.permute.xlu0 0
        %503 = vperm.xlu0 %502, %v489
        %v504 = vpop.permute.xlu0 %503
        %vm505 = vcmp.eq.s32.totalorder %v457, %v504
        %v506 = vsel %vm505, %v488, 0.0
        %v507 = vsel %vm461, %v506, 0.0
        %508 = vadd.xlane.f32.xlu0 %v507
        %v509 = vpop.xlane.xlu0 %508
        %v510 = vsub.f32 %v501, %v509
        %v511 = vsel %vm455, %v510, 0.0
        %v512 = vadd.f32 %v487, %v511
        %513 = vst.msk [vmem:[#allocation3] sm:$0xff] %vm485, %v512
        %v514 = vld [vmem:[#allocation4] sm:$0xff]
        %v515 = vld [vmem:[%s387] sm:$0xff]
        %v516 = vsel %vm455, %v515, 0.0
        %v517 = vadd.f32 %v514, %v516
        %518 = vst.msk [vmem:[#allocation4] sm:$0xff] %vm485, %v517
        %p519 = scmp.eq.s32.totalorder %s24, 1
        // Predicated region
        $region45: #{tpu_custom_call.1} parent=39 // pred_check
          %p520 = pneg %p519
        $region46: #{tpu_custom_call.1} parent=39 // pred_check_branch
          %522 = sbr.rel (%p520) target = $region48
        $region47: #{tpu_custom_call.1} parent=39 // pred_region
          %v523 = vld [vmem:[#allocation2] sm:$0xff]
          %v524 = vsel %vm485, %v523, 0.0
          %525 = vadd.xlane.f32.xlu0 %v524
          %v526 = vpop.xlane.xlu0 %525
          %v527 = vrot.slane %v526, 4
          %v528 = vadd.f32 %v526, %v527
          %v529 = vrot.slane %v528, 2
          %v530 = vadd.f32 %v528, %v529
          %v531 = vrot.slane %v530, 1
          %v532 = vadd.f32 %v530, %v531
          %s533 = vtos %v532
          %v534 = vld [vmem:[#allocation3] sm:$0xff]
          %v535 = vsel %vm485, %v534, 0.0
          %536 = vadd.xlane.f32.xlu0 %v535
          %v537 = vpop.xlane.xlu0 %536
          %v538 = vrot.slane %v537, 4
          %v539 = vadd.f32 %v537, %v538
          %v540 = vrot.slane %v539, 2
          %v541 = vadd.f32 %v539, %v540
          %v542 = vrot.slane %v541, 1
          %v543 = vadd.f32 %v541, %v542
          %s544 = vtos %v543
          %v545 = vld [vmem:[#allocation4] sm:$0xff]
          %v546 = vsel %vm485, %v545, 0.0
          %547 = vadd.xlane.f32.xlu0 %v546
          %v548 = vpop.xlane.xlu0 %547
          %v549 = vrot.slane %v548, 4
          %v550 = vadd.f32 %v548, %v549
          %v551 = vrot.slane %v550, 2
          %v552 = vadd.f32 %v550, %v551
          %v553 = vrot.slane %v552, 1
          %v554 = vadd.f32 %v552, %v553
          %s555 = vtos %v554
          %vm556 = vcmp.eq.s32.totalorder %v457, 0
          %vm557 = vcmp.eq.s32.totalorder %v457, 1
          %vm558 = vcmp.eq.s32.totalorder %v457, 2
          %v559 = vstv %s555
          %v560 = vsel %vm558, %v559, 0.0
          %v561 = vstv %s544
          %v562 = vsel %vm557, %v561, %v560
          %v563 = vstv %s533
          %v564 = vsel %vm556, %v563, %v562
          %565 = vst [vmem:[%s379] sm:$0xff] %v564
        $region48: #{tpu_custom_call.1} parent=39 // pred_fallthru
          _
        %s566 = sand.u32 %s209, 1
        %s567 = scalar_lea.sflag [#allocation6], %s566
        %s568 = sand.u32 %s209, 1
        %s569 = smul.addr %s568, 8
        %s570 = scalar_lea.vmem [#allocation5], %s569
        // Predicated region
        $region49: #{tpu_custom_call.1} parent=39 // pred_check
          %p571 = pneg %p219
        $region50: #{tpu_custom_call.1} parent=39 // pred_check_branch
          %573 = sbr.rel (%p571) target = $region52
        $region51: #{tpu_custom_call.1} parent=39 // pred_region
          %575 = vsyncadd %s567, 0
          %s576 = smul.addr %s23, 8
          %s577 = scalar_lea.hbm %s5, %s576
          %s579 = sshll.u32 %s570, 4
          %s580 = int_to_ptr.vmem [resolvable:$true] %s579
          %s581 = sshll.u32 %s577, 4
          %s582 = int_to_ptr.hbm [resolvable:$true] %s581
          %584 = dma.vmem_to_hbm [thread:$0]  %s580, 128, %s582, %s567
        $region52: #{tpu_custom_call.1} parent=39 // pred_fallthru
          _
      $region40: #{tpu_custom_call.1} parent=5 // pred_fallthru
        _
      %p585 = scmp.le.s32.totalorder 2, %s14
      // Predicated region
      $region53: #{tpu_custom_call.1} parent=5 // pred_check
        %p586 = pneg %p585
      $region54: #{tpu_custom_call.1} parent=5 // pred_check_branch
        %588 = sbr.rel (%p586) target = $region56
      $region55: #{tpu_custom_call.1} parent=5 // pred_region
        %s589 = ssub.s32 %s14, 2
        // Predicated region
        $region57: #{tpu_custom_call.1} parent=55 // pred_check
          %p590 = pneg %p225
        $region58: #{tpu_custom_call.1} parent=55 // pred_check_branch
          %592 = sbr.rel (%p590) target = $region60
        $region59: #{tpu_custom_call.1} parent=55 // pred_region
          %s593 = sand.u32 %s210, 1
          %s594 = scalar_lea.sflag [#allocation6], %s593
          %s595 = sand.u32 %s210, 1
          %s596 = smul.addr %s595, 8
          %s597 = scalar_lea.vmem [#allocation5], %s596
          %599 = dma.done %s594, 128
        $region60: #{tpu_custom_call.1} parent=55 // pred_fallthru
          _
      $region56: #{tpu_custom_call.1} parent=5 // pred_fallthru
        _
    $region6: #{tpu_custom_call.1} parent=1 // loop_footer
      %s18 = sadd.s32 1, %s14
    $region7: #{tpu_custom_call.1} parent=1 // loop_footer_branch
      %13 = sbr.rel target = $region3
    $region8: #{tpu_custom_call.1} parent=1 // loop_exit
      _
    %600 = vsyncpa [#allocation6], 1
    %s601 = scalar_lea.sflag [#allocation6], 1
    %602 = vsyncpa %s601, 1

</llo_original>
